<compile_context>
chip_gen: v6e
topology: v6e:2x2x1
jax: 0.10.0
libtpu: 0.0.40
codegen_flags: <defaults>
</compile_context>

<pallas_src>
import functools
import warnings

import jax
import jax.numpy as jnp
from jax.experimental import pallas as pl
from jax.experimental.pallas import tpu as pltpu

# Harmless if donation is fully consumed; keeps stdout/stderr clean otherwise.
warnings.filterwarnings("ignore", message=".*donat.*")


def _add_scale_kernel(x_ref, y_ref, o_ref, *, scale):
    s = x_ref[...] + y_ref[...]
    if scale != 1.0:
        s = s * jnp.asarray(scale, dtype=s.dtype)
    o_ref[...] = s


_TILE_BYTES_BUDGET = 4 * 1024 * 1024    # per-buffer tile budget (measured roofline plateau)
_MAX_COLS = 8 * 1024                    # cap of the lane-dense last dim
_MIN_VMEM_LIMIT = 32 * 1024 * 1024      # > 24 MiB footprint; v5e scoped default is only 16 MiB


def _vmem_limit_bytes():
    """Generation-aware scoped-VMEM limit (v7x has only 64 MiB physical)."""
    cap = 64 * 1024 * 1024  # conservative default = v7x physical
    try:
        cap = int(getattr(pltpu.get_tpu_info(), "vmem_capacity_bytes", cap))
    except Exception:
        pass
    # Footprint is 3 streams x 2 buffers x <=4 MiB tiles = 24 MiB; leave headroom.
    return max(_MIN_VMEM_LIMIT, min(48 * 1024 * 1024, cap // 2))


def pallas_add_allreduce(x, y, *, world_size=1):
    """(x + y) summed over `world_size` replicated ranks == (x + y) * world_size."""
    assert x.shape == y.shape and x.dtype == y.dtype
    orig_shape = x.shape
    total = x.size
    assert total % 128 == 0, "total elements must be a multiple of 128"
    itemsize = jnp.dtype(x.dtype).itemsize

    # dtype-aware minimum sublane tile (f32: 8, bf16: 16, int8/fp8: 32)
    sublane_min = {4: 8, 2: 16, 1: 32}.get(itemsize, 8)

    # Lane-dense 2D slab: widen the last dim (multiple of 128) only while the
    # row count stays sublane-full, so vregs are dense and stores unmasked.
    cols = 128
    while (total % (cols * 2) == 0
           and cols * 2 <= _MAX_COLS
           and total // (cols * 2) >= sublane_min):
        cols *= 2
    rows = total // cols

    x2 = x.reshape(rows, cols)
    y2 = y.reshape(rows, cols)

    kernel = functools.partial(_add_scale_kernel, scale=float(world_size))
    vmem_limit = _vmem_limit_bytes()
    full_bytes = total * itemsize
    cost = pl.CostEstimate(
        flops=total * (2 if world_size != 1 else 1),
        transcendentals=0,
        bytes_accessed=3 * total * itemsize,
    )

    if full_bytes <= _TILE_BYTES_BUDGET:
        # Small input: single full-array block, no grid (each grid step costs
        # ~0.35 us of fixed overhead; the smoke shape is only ~2 vregs).
        out = pl.pallas_call(
            kernel,
            out_shape=jax.ShapeDtypeStruct((rows, cols), x.dtype),
            in_specs=[
                pl.BlockSpec((rows, cols), lambda: (0, 0)),
                pl.BlockSpec((rows, cols), lambda: (0, 0)),
            ],
            out_specs=pl.BlockSpec((rows, cols), lambda: (0, 0)),
            input_output_aliases={0: 0},  # legal: x is donated into the jit
            cost_estimate=cost,
            compiler_params=pltpu.CompilerParams(
                vmem_limit_bytes=vmem_limit),
        )(x2, y2)
        return out.reshape(orig_shape)

    # Large input: tiled, double-buffered path.  Pad rows up to the sublane
    # minimum if needed (never fall back to one giant block).
    pad_rows = (-rows) % sublane_min
    if pad_rows:
        x2 = jnp.pad(x2, ((0, pad_rows), (0, 0)))
        y2 = jnp.pad(y2, ((0, pad_rows), (0, 0)))
    rows_p = rows + pad_rows

    # Grow the row-tile (power of two, multiple of the sublane minimum) toward
    # the per-buffer VMEM budget.
    max_tr = max(
        sublane_min,
        (_TILE_BYTES_BUDGET // (cols * itemsize)) // sublane_min * sublane_min,
    )
    tr = sublane_min
    while tr * 2 <= min(rows_p, max_tr) and rows_p % (tr * 2) == 0:
        tr *= 2
    # Keep the parallel grid >= 2 and prefer an even length so both v7x
    # TensorCores get balanced work (harmless on v5e/v6e).
    while rows_p // tr < 2 and tr > sublane_min:
        tr //= 2
    if (rows_p // tr) % 2 != 0 and tr // 2 >= sublane_min and rows_p % (tr // 2) == 0:
        tr //= 2

    out = pl.pallas_call(
        kernel,
        out_shape=jax.ShapeDtypeStruct((rows_p, cols), x.dtype),
        grid=(rows_p // tr,),
        in_specs=[
            pl.BlockSpec((tr, cols), lambda i: (i, 0)),
            pl.BlockSpec((tr, cols), lambda i: (i, 0)),
        ],
        out_specs=pl.BlockSpec((tr, cols), lambda i: (i, 0)),
        input_output_aliases={0: 0},
        cost_estimate=cost,
        compiler_params=pltpu.CompilerParams(
            dimension_semantics=("parallel",),   # megacore sharding on v7x
            vmem_limit_bytes=vmem_limit),
    )(x2, y2)

    if pad_rows:
        out = out[:rows]
    return out.reshape(orig_shape)


@functools.partial(jax.jit, donate_argnums=(0,), static_argnames=("world_size",))
def _forward_impl(x, y, world_size):
    return pallas_add_allreduce(x, y, world_size=world_size)


def cache_hcom_forward(x, y):
    """Equivalent of CacheHcomModel.forward: (x + y), all-reduced over ranks.

    Every device holds identical (replicated) x, y — matching the torch smoke
    test — so all_reduce(sum) of replicated data is a scalar multiply by the
    global world size, folded into the Pallas kernel.  NOTE: x is donated; the
    caller must not reuse x's buffer after this call.
    """
    ws = jax.device_count()  # global world size (multi-host correct for replicated data)
    return _forward_impl(x, y, world_size=ws)


if __name__ == "__main__":
    key = jax.random.PRNGKey(0)
    kx, ky = jax.random.split(key)
    # NCHW inputs, small smoke-test shapes.
    x = jax.random.normal(kx, (2, 4, 16, 16), dtype=jnp.float32)
    y = jax.random.normal(ky, (2, 4, 16, 16), dtype=jnp.float32)

    # Reference computed BEFORE the call: x is donated into the jit.
    ws = jax.device_count()
    ref = jax.block_until_ready((x + y) * ws)
    shape, dtype = x.shape, x.dtype

    out = cache_hcom_forward(x, y)   # do not use x after this point (donated)
    out = jax.block_until_ready(out)

    assert out.shape == shape and out.dtype == dtype
    assert jnp.allclose(out, ref, atol=1e-5, rtol=1e-5)

    print("KERNEL_OK")
</pallas_src>

<mosaic_0001>
module attributes {stable_mosaic.version = 11 : i64} {
  func.func @_add_scale_kernel(%arg0: memref<8x256xf32, #tpu.memory_space<vmem>>, %arg1: memref<8x256xf32, #tpu.memory_space<vmem>>, %arg2: memref<8x256xf32, #tpu.memory_space<vmem>>) attributes {dimension_semantics = [], scalar_prefetch = 0 : i64, scratch_operands = 0 : i64, tpu.core_type = #tpu.core_type<tc>} {
    %c0 = arith.constant 0 : index
    %c0_0 = arith.constant 0 : index
    %0 = vector.load %arg0[%c0, %c0_0] : memref<8x256xf32, #tpu.memory_space<vmem>>, vector<8x256xf32>
    %c0_1 = arith.constant 0 : index
    %c0_2 = arith.constant 0 : index
    %1 = vector.load %arg1[%c0_1, %c0_2] : memref<8x256xf32, #tpu.memory_space<vmem>>, vector<8x256xf32>
    %2 = arith.addf %0, %1 : vector<8x256xf32>
    %c0_3 = arith.constant 0 : index
    %c0_4 = arith.constant 0 : index
    %3 = vector.load %arg2[%c0_3, %c0_4] : memref<8x256xf32, #tpu.memory_space<vmem>>, vector<8x256xf32>
    tpu.vector_store %arg2[%c0_3, %c0_4], %2 {strides = array<i32>} : memref<8x256xf32, #tpu.memory_space<vmem>>, vector<8x256xf32>,
    return
  }
}

</mosaic_0001>

<llo_original>
// kernel: _forward_impl.1
$region0: #{_forward_impl.1}
  #allocation0 [shape = 'u32[]', space=smem, size = 0x4, offset = 0x4, fixed_abs, tag = 'smem constant byte address 0x4 - core index']
  #allocation1 [shape = 'u32[144,128]{1,0:T(1,128)}', space=vmem, size = 0x12000, scoped, tag = 'internal scratch']
  %s0 = inlined_call_operand.vmem [shape: f32[8,256], index: 0, kind: input, shape index: {}, may-alias: {0,2}]
  %s1 = inlined_call_operand.vmem [shape: f32[8,256], index: 1, kind: input, shape index: {}]
  %s2 = inlined_call_operand.vmem [shape: f32[8,256], index: 2, kind: output, shape index: {}, may-alias: {0,2}]
  %s3 = sld [smem:[#allocation0]]
  $region18: #{_forward_impl.1} parent=0
    _
  %s5 = ssub.s32 1, %s3
  %s6 = scalar_select 0, %s5, %s3
  // Predicated region
  $region2: #{_forward_impl.1} parent=0 // pred_check
    _
  $region3: #{_forward_impl.1} parent=0 // pred_check_branch
    %8 = sbr.rel (0) target = $region5
  $region4: #{_forward_impl.1} parent=0 // pred_region
    _
  $region5: #{_forward_impl.1} parent=0 // pred_fallthru
    _
  // Predicated region
  $region6: #{_forward_impl.1} parent=0 // pred_check
    _
  $region7: #{_forward_impl.1} parent=0 // pred_check_branch
    %10 = sbr.rel (0) target = $region9
  $region8: #{_forward_impl.1} parent=0 // pred_region
    _
  $region9: #{_forward_impl.1} parent=0 // pred_fallthru
    _
  %v11 = vld [vmem:[%s0] sm:$0xff]
  %v12 = vld [vmem:[%s0 + $0x8] sm:$0xff]
  %v13 = vld [vmem:[%s1] sm:$0xff]
  %v14 = vld [vmem:[%s1 + $0x8] sm:$0xff]
  %v15 = vadd.f32 %v11, %v13
  %v16 = vadd.f32 %v12, %v14
  %17 = vst [vmem:[%s2] sm:$0xff] %v15
  %18 = vst [vmem:[%s2 + $0x8] sm:$0xff] %v16
  // Predicated region
  $region10: #{_forward_impl.1} parent=0 // pred_check
    _
  $region11: #{_forward_impl.1} parent=0 // pred_check_branch
    %20 = sbr.rel (0) target = $region13
  $region12: #{_forward_impl.1} parent=0 // pred_region
    _
  $region13: #{_forward_impl.1} parent=0 // pred_fallthru
    _
  // Predicated region
  $region14: #{_forward_impl.1} parent=0 // pred_check
    _
  $region15: #{_forward_impl.1} parent=0 // pred_check_branch
    %22 = sbr.rel (0) target = $region17
  $region16: #{_forward_impl.1} parent=0 // pred_region
    _
  $region17: #{_forward_impl.1} parent=0 // pred_fallthru
    _

</llo_original>
